<compile_context>
chip_gen: v5e
topology: v5e:2x2
jax: 0.10.0
libtpu: 0.0.40
codegen_flags: <defaults>
</compile_context>

<pallas_src>
import jax
import jax.numpy as jnp
from jax.experimental import pallas as pl
from jax.experimental.pallas import tpu as pltpu


# ---------------------------------------------------------------------------
# Pallas kernel: fused 3x3 conv (as 9 shifted tap-matmuls) + bias + ReLU
# ---------------------------------------------------------------------------
def _make_conv3x3_kernel(w_img):
    """Returns a kernel closed over the static image width."""

    def kernel(x_ref, w_ref, b_ref, m_ref, o_ref):
        # x_ref: (1, C, L)      bf16, L = H*W + 2*(w_img+1)  (flat plane, end-padded)
        # w_ref: (9, Cout, C)   bf16, per-tap weight slabs (resident)
        # b_ref: (Cout, 1)      f32  (resident)
        # m_ref: (9, H*W)       bf16, per-tap validity masks (resident)
        # o_ref: (1, Cout, H*W) f32
        _, n_out, hw = o_ref.shape
        base = w_img + 1

        xt = x_ref[0]                                   # (C, L), resident in VMEM
        acc = jnp.zeros((n_out, hw), jnp.float32)
        for dh in range(3):                             # static unroll: 9 taps
            for dw in range(3):
                t = dh * 3 + dw
                off = (dh - 1) * w_img + (dw - 1)
                xs = xt[:, base + off: base + off + hw]   # (C, HW) static slice
                xs = xs * m_ref[t:t + 1, :]               # zero wrapped/border taps
                acc = acc + jnp.dot(w_ref[t], xs,
                                    preferred_element_type=jnp.float32)
        acc = acc + b_ref[...]                            # (Cout, 1) lane-broadcast
        o_ref[0] = jnp.maximum(acc, 0.0).astype(o_ref.dtype)

    return kernel


def conv3x3_bias_relu(x, weight, bias):
    """x: (N,C,H,W) f32; weight: (Cout,C,3,3) f32; bias: (Cout,) f32 -> (N,Cout,H,W) f32."""
    N, C, H, W = x.shape
    Cout = weight.shape[0]
    HW = H * W
    L = HW + 2 * (W + 1)

    # Glue (one cheap pass over the input, no 9x im2col blow-up): flatten the
    # spatial plane, end-pad by W+1 zeros so every tap offset is a static
    # in-bounds slice, and cast the streamed operand to bf16.
    x_flat = jnp.pad(x.astype(jnp.bfloat16).reshape(N, C, HW),
                     ((0, 0), (0, 0), (W + 1, W + 1)))            # (N, C, L)

    # Per-tap weight slabs and bias (tiny, resident across the grid).
    w_taps = jnp.transpose(weight, (2, 3, 0, 1)).reshape(9, Cout, C)
    w_taps = w_taps.astype(jnp.bfloat16)                           # (9, Cout, C)
    bias_col = bias.reshape(Cout, 1).astype(jnp.float32)           # (Cout, 1)

    # Per-tap validity masks over the flattened plane: implement SAME zero
    # padding and kill the horizontal wrap of the flat row-major layout.
    hh = jnp.arange(H)[:, None]
    ww = jnp.arange(W)[None, :]
    masks = []
    for dh in range(3):
        for dw in range(3):
            kh, kw = dh - 1, dw - 1
            m = ((hh + kh >= 0) & (hh + kh < H) &
                 (ww + kw >= 0) & (ww + kw < W))
            masks.append(m.reshape(HW))
    mask_taps = jnp.stack(masks).astype(jnp.bfloat16)              # (9, HW)

    flops = 2 * N * 9 * Cout * C * HW
    bytes_accessed = (x_flat.size * 2 + w_taps.size * 2 + mask_taps.size * 2
                      + bias_col.size * 4 + N * Cout * HW * 4)

    out_flat = pl.pallas_call(
        _make_conv3x3_kernel(W),
        out_shape=jax.ShapeDtypeStruct((N, Cout, HW), jnp.float32),
        grid_spec=pltpu.PrefetchScalarGridSpec(
            num_scalar_prefetch=0,
            grid=(N,),
            in_specs=[
                pl.BlockSpec((1, C, L), lambda n: (n, 0, 0)),       # streamed plane
                pl.BlockSpec((9, Cout, C), lambda n: (0, 0, 0)),    # resident weights
                pl.BlockSpec((Cout, 1), lambda n: (0, 0)),          # resident bias
                pl.BlockSpec((9, HW), lambda n: (0, 0)),            # resident masks
            ],
            out_specs=pl.BlockSpec((1, Cout, HW), lambda n: (n, 0, 0)),
        ),
        compiler_params=pltpu.CompilerParams(
            dimension_semantics=("parallel",),
        ),
        cost_estimate=pl.CostEstimate(flops=flops, transcendentals=0,
                                      bytes_accessed=bytes_accessed),
    )(x_flat, w_taps, bias_col, mask_taps)

    # Metadata-only reshape; output is already channel-first (NCHW).
    return out_flat.reshape(N, Cout, H, W)


# ---------------------------------------------------------------------------
# Synthetic "TRT engine" + TRTModule-equivalent wrapper
# ---------------------------------------------------------------------------
class SyntheticEngine:
    """Stands in for a serialized TensorRT engine: conv3x3(pad=1) + bias + ReLU."""

    def __init__(self, in_channels, out_channels, key):
        kw, kb = jax.random.split(key)
        # PyTorch conv weight layout: (Cout, Cin, KH, KW)
        self.weight = jax.random.normal(
            kw, (out_channels, in_channels, 3, 3), jnp.float32) * 0.1
        self.bias = jax.random.normal(kb, (out_channels,), jnp.float32) * 0.1
        self.in_channels = in_channels
        self.out_channels = out_channels


class TRTModule:
    """JAX/Pallas analogue of tools/runtrt.py::TRTModule.

    forward(*inputs) binds the (single) input, runs the engine, and returns a
    single output tensor (matching `if len(outputs) == 1: outputs = outputs[0]`).
    """

    def __init__(self, engine=None, input_names=None, output_names=None):
        self.engine = engine
        self.input_names = input_names
        self.output_names = output_names

    def forward(self, *inputs):
        x = inputs[0]                        # (N, C, H, W), NCHW like PyTorch
        eng = self.engine
        y = conv3x3_bias_relu(x, eng.weight, eng.bias)   # (N, Cout, H, W) f32
        outputs = (y,)
        if len(outputs) == 1:
            return outputs[0]
        return outputs

    __call__ = forward


# ---------------------------------------------------------------------------
# Reference (pure JAX) for sanity checking
# ---------------------------------------------------------------------------
def reference_forward(engine, x):
    y = jax.lax.conv_general_dilated(
        x.astype(jnp.float32), engine.weight,
        window_strides=(1, 1), padding="SAME",
        dimension_numbers=("NCHW", "OIHW", "NCHW"))
    y = y + engine.bias.reshape(1, -1, 1, 1)
    return jnp.maximum(y, 0.0)


if __name__ == "__main__":
    key = jax.random.PRNGKey(0)
    k_eng, k_x = jax.random.split(key)

    batch, cin, cout, hw = 2, 4, 8, 16
    engine = SyntheticEngine(cin, cout, k_eng)
    module = TRTModule(engine=engine,
                       input_names=["input_0"],
                       output_names=["output_0"])

    x = jax.random.normal(k_x, (batch, cin, hw, hw), jnp.float32)

    out = module(x)
    out = jax.block_until_ready(out)

    ref = jax.block_until_ready(reference_forward(engine, x))
    assert out.shape == (batch, cout, hw, hw)
    # bf16 input/weight stream with f32 accumulation -> loosened tolerance.
    assert jnp.allclose(out, ref, atol=5e-2, rtol=5e-2), "mismatch vs reference"

    print("KERNEL_OK")
</pallas_src>

<mosaic_0001>
module attributes {stable_mosaic.version = 11 : i64} {
  func.func @kernel(%arg0: i32, %arg1: memref<1x4x290xbf16, #tpu.memory_space<vmem>>, %arg2: memref<9x8x4xbf16, #tpu.memory_space<vmem>>, %arg3: memref<8x1xf32, #tpu.memory_space<vmem>>, %arg4: memref<9x256xbf16, #tpu.memory_space<vmem>>, %arg5: memref<1x8x256xf32, #tpu.memory_space<vmem>>) attributes {dimension_semantics = [#tpu.dimension_semantics<parallel>], iteration_bounds = array<i64: 2>, scalar_prefetch = 0 : i64, scratch_operands = 0 : i64, tpu.core_type = #tpu.core_type<tc>, window_params = [{transform_indices = @transform_0, window_bounds = array<i64: 1, 4, 290>}, {pipeline_mode = #tpu.pipeline_mode<synchronous>, transform_indices = @transform_1, window_bounds = array<i64: 9, 8, 4>}, {pipeline_mode = #tpu.pipeline_mode<synchronous>, transform_indices = @transform_2, window_bounds = array<i64: 8, 1>}, {pipeline_mode = #tpu.pipeline_mode<synchronous>, transform_indices = @transform_3, window_bounds = array<i64: 9, 256>}, {transform_indices = @transform_4, window_bounds = array<i64: 1, 8, 256>}]} {
    %c0 = arith.constant 0 : index
    %c0_0 = arith.constant 0 : index
    %c0_1 = arith.constant 0 : index
    %0 = vector.load %arg1[%c0, %c0_0, %c0_1] : memref<1x4x290xbf16, #tpu.memory_space<vmem>>, vector<1x4x290xbf16>
    %1 = vector.shape_cast %0 : vector<1x4x290xbf16> to vector<4x290xbf16>
    %cst = arith.constant 0.000000e+00 : f32
    %2 = vector.broadcast %cst : f32 to vector<8x256xf32>
    %3 = vector.extract_strided_slice %1 {offsets = [0, 0], sizes = [4, 256], strides = [1, 1]} : vector<4x290xbf16> to vector<4x256xbf16>
    %c0_2 = arith.constant 0 : index
    %c0_3 = arith.constant 0 : index
    %4 = vector.load %arg4[%c0_2, %c0_3] : memref<9x256xbf16, #tpu.memory_space<vmem>>, vector<1x256xbf16>
    %5 = vector.broadcast %4 : vector<1x256xbf16> to vector<4x256xbf16>
    %6 = arith.mulf %3, %5 : vector<4x256xbf16>
    %c0_4 = arith.constant 0 : index
    %c0_5 = arith.constant 0 : index
    %c0_6 = arith.constant 0 : index
    %7 = vector.load %arg2[%c0_4, %c0_5, %c0_6] : memref<9x8x4xbf16, #tpu.memory_space<vmem>>, vector<1x8x4xbf16>
    %8 = vector.shape_cast %7 : vector<1x8x4xbf16> to vector<8x4xbf16>
    %cst_7 = arith.constant dense<0.000000e+00> : vector<8x256xf32>
    %9 = tpu.matmul %8, %6, %cst_7 {dimension_numbers = #tpu.dot_dimension_numbers<[1], [0], [0], [1], [0, 0, 1, 1], [], []>} : vector<8x4xbf16>, vector<4x256xbf16>, vector<8x256xf32> -> vector<8x256xf32>
    %10 = arith.addf %2, %9 : vector<8x256xf32>
    %11 = vector.extract_strided_slice %1 {offsets = [0, 1], sizes = [4, 256], strides = [1, 1]} : vector<4x290xbf16> to vector<4x256xbf16>
    %c1 = arith.constant 1 : index
    %c0_8 = arith.constant 0 : index
    %12 = vector.load %arg4[%c1, %c0_8] : memref<9x256xbf16, #tpu.memory_space<vmem>>, vector<1x256xbf16>
    %13 = vector.broadcast %12 : vector<1x256xbf16> to vector<4x256xbf16>
    %14 = arith.mulf %11, %13 : vector<4x256xbf16>
    %c1_9 = arith.constant 1 : index
    %c0_10 = arith.constant 0 : index
    %c0_11 = arith.constant 0 : index
    %15 = vector.load %arg2[%c1_9, %c0_10, %c0_11] : memref<9x8x4xbf16, #tpu.memory_space<vmem>>, vector<1x8x4xbf16>
    %16 = vector.shape_cast %15 : vector<1x8x4xbf16> to vector<8x4xbf16>
    %cst_12 = arith.constant dense<0.000000e+00> : vector<8x256xf32>
    %17 = tpu.matmul %16, %14, %cst_12 {dimension_numbers = #tpu.dot_dimension_numbers<[1], [0], [0], [1], [0, 0, 1, 1], [], []>} : vector<8x4xbf16>, vector<4x256xbf16>, vector<8x256xf32> -> vector<8x256xf32>
    %18 = arith.addf %10, %17 : vector<8x256xf32>
    %19 = vector.extract_strided_slice %1 {offsets = [0, 2], sizes = [4, 256], strides = [1, 1]} : vector<4x290xbf16> to vector<4x256xbf16>
    %c2 = arith.constant 2 : index
    %c0_13 = arith.constant 0 : index
    %20 = vector.load %arg4[%c2, %c0_13] : memref<9x256xbf16, #tpu.memory_space<vmem>>, vector<1x256xbf16>
    %21 = vector.broadcast %20 : vector<1x256xbf16> to vector<4x256xbf16>
    %22 = arith.mulf %19, %21 : vector<4x256xbf16>
    %c2_14 = arith.constant 2 : index
    %c0_15 = arith.constant 0 : index
    %c0_16 = arith.constant 0 : index
    %23 = vector.load %arg2[%c2_14, %c0_15, %c0_16] : memref<9x8x4xbf16, #tpu.memory_space<vmem>>, vector<1x8x4xbf16>
    %24 = vector.shape_cast %23 : vector<1x8x4xbf16> to vector<8x4xbf16>
    %cst_17 = arith.constant dense<0.000000e+00> : vector<8x256xf32>
    %25 = tpu.matmul %24, %22, %cst_17 {dimension_numbers = #tpu.dot_dimension_numbers<[1], [0], [0], [1], [0, 0, 1, 1], [], []>} : vector<8x4xbf16>, vector<4x256xbf16>, vector<8x256xf32> -> vector<8x256xf32>
    %26 = arith.addf %18, %25 : vector<8x256xf32>
    %27 = vector.extract_strided_slice %1 {offsets = [0, 16], sizes = [4, 256], strides = [1, 1]} : vector<4x290xbf16> to vector<4x256xbf16>
    %c3 = arith.constant 3 : index
    %c0_18 = arith.constant 0 : index
    %28 = vector.load %arg4[%c3, %c0_18] : memref<9x256xbf16, #tpu.memory_space<vmem>>, vector<1x256xbf16>
    %29 = vector.broadcast %28 : vector<1x256xbf16> to vector<4x256xbf16>
    %30 = arith.mulf %27, %29 : vector<4x256xbf16>
    %c3_19 = arith.constant 3 : index
    %c0_20 = arith.constant 0 : index
    %c0_21 = arith.constant 0 : index
    %31 = vector.load %arg2[%c3_19, %c0_20, %c0_21] : memref<9x8x4xbf16, #tpu.memory_space<vmem>>, vector<1x8x4xbf16>
    %32 = vector.shape_cast %31 : vector<1x8x4xbf16> to vector<8x4xbf16>
    %cst_22 = arith.constant dense<0.000000e+00> : vector<8x256xf32>
    %33 = tpu.matmul %32, %30, %cst_22 {dimension_numbers = #tpu.dot_dimension_numbers<[1], [0], [0], [1], [0, 0, 1, 1], [], []>} : vector<8x4xbf16>, vector<4x256xbf16>, vector<8x256xf32> -> vector<8x256xf32>
    %34 = arith.addf %26, %33 : vector<8x256xf32>
    %35 = vector.extract_strided_slice %1 {offsets = [0, 17], sizes = [4, 256], strides = [1, 1]} : vector<4x290xbf16> to vector<4x256xbf16>
    %c4 = arith.constant 4 : index
    %c0_23 = arith.constant 0 : index
    %36 = vector.load %arg4[%c4, %c0_23] : memref<9x256xbf16, #tpu.memory_space<vmem>>, vector<1x256xbf16>
    %37 = vector.broadcast %36 : vector<1x256xbf16> to vector<4x256xbf16>
    %38 = arith.mulf %35, %37 : vector<4x256xbf16>
    %c4_24 = arith.constant 4 : index
    %c0_25 = arith.constant 0 : index
    %c0_26 = arith.constant 0 : index
    %39 = vector.load %arg2[%c4_24, %c0_25, %c0_26] : memref<9x8x4xbf16, #tpu.memory_space<vmem>>, vector<1x8x4xbf16>
    %40 = vector.shape_cast %39 : vector<1x8x4xbf16> to vector<8x4xbf16>
    %cst_27 = arith.constant dense<0.000000e+00> : vector<8x256xf32>
    %41 = tpu.matmul %40, %38, %cst_27 {dimension_numbers = #tpu.dot_dimension_numbers<[1], [0], [0], [1], [0, 0, 1, 1], [], []>} : vector<8x4xbf16>, vector<4x256xbf16>, vector<8x256xf32> -> vector<8x256xf32>
    %42 = arith.addf %34, %41 : vector<8x256xf32>
    %43 = vector.extract_strided_slice %1 {offsets = [0, 18], sizes = [4, 256], strides = [1, 1]} : vector<4x290xbf16> to vector<4x256xbf16>
    %c5 = arith.constant 5 : index
    %c0_28 = arith.constant 0 : index
    %44 = vector.load %arg4[%c5, %c0_28] : memref<9x256xbf16, #tpu.memory_space<vmem>>, vector<1x256xbf16>
    %45 = vector.broadcast %44 : vector<1x256xbf16> to vector<4x256xbf16>
    %46 = arith.mulf %43, %45 : vector<4x256xbf16>
    %c5_29 = arith.constant 5 : index
    %c0_30 = arith.constant 0 : index
    %c0_31 = arith.constant 0 : index
    %47 = vector.load %arg2[%c5_29, %c0_30, %c0_31] : memref<9x8x4xbf16, #tpu.memory_space<vmem>>, vector<1x8x4xbf16>
    %48 = vector.shape_cast %47 : vector<1x8x4xbf16> to vector<8x4xbf16>
    %cst_32 = arith.constant dense<0.000000e+00> : vector<8x256xf32>
    %49 = tpu.matmul %48, %46, %cst_32 {dimension_numbers = #tpu.dot_dimension_numbers<[1], [0], [0], [1], [0, 0, 1, 1], [], []>} : vector<8x4xbf16>, vector<4x256xbf16>, vector<8x256xf32> -> vector<8x256xf32>
    %50 = arith.addf %42, %49 : vector<8x256xf32>
    %51 = vector.extract_strided_slice %1 {offsets = [0, 32], sizes = [4, 256], strides = [1, 1]} : vector<4x290xbf16> to vector<4x256xbf16>
    %c6 = arith.constant 6 : index
    %c0_33 = arith.constant 0 : index
    %52 = vector.load %arg4[%c6, %c0_33] : memref<9x256xbf16, #tpu.memory_space<vmem>>, vector<1x256xbf16>
    %53 = vector.broadcast %52 : vector<1x256xbf16> to vector<4x256xbf16>
    %54 = arith.mulf %51, %53 : vector<4x256xbf16>
    %c6_34 = arith.constant 6 : index
    %c0_35 = arith.constant 0 : index
    %c0_36 = arith.constant 0 : index
    %55 = vector.load %arg2[%c6_34, %c0_35, %c0_36] : memref<9x8x4xbf16, #tpu.memory_space<vmem>>, vector<1x8x4xbf16>
    %56 = vector.shape_cast %55 : vector<1x8x4xbf16> to vector<8x4xbf16>
    %cst_37 = arith.constant dense<0.000000e+00> : vector<8x256xf32>
    %57 = tpu.matmul %56, %54, %cst_37 {dimension_numbers = #tpu.dot_dimension_numbers<[1], [0], [0], [1], [0, 0, 1, 1], [], []>} : vector<8x4xbf16>, vector<4x256xbf16>, vector<8x256xf32> -> vector<8x256xf32>
    %58 = arith.addf %50, %57 : vector<8x256xf32>
    %59 = vector.extract_strided_slice %1 {offsets = [0, 33], sizes = [4, 256], strides = [1, 1]} : vector<4x290xbf16> to vector<4x256xbf16>
    %c7 = arith.constant 7 : index
    %c0_38 = arith.constant 0 : index
    %60 = vector.load %arg4[%c7, %c0_38] : memref<9x256xbf16, #tpu.memory_space<vmem>>, vector<1x256xbf16>
    %61 = vector.broadcast %60 : vector<1x256xbf16> to vector<4x256xbf16>
    %62 = arith.mulf %59, %61 : vector<4x256xbf16>
    %c7_39 = arith.constant 7 : index
    %c0_40 = arith.constant 0 : index
    %c0_41 = arith.constant 0 : index
    %63 = vector.load %arg2[%c7_39, %c0_40, %c0_41] : memref<9x8x4xbf16, #tpu.memory_space<vmem>>, vector<1x8x4xbf16>
    %64 = vector.shape_cast %63 : vector<1x8x4xbf16> to vector<8x4xbf16>
    %cst_42 = arith.constant dense<0.000000e+00> : vector<8x256xf32>
    %65 = tpu.matmul %64, %62, %cst_42 {dimension_numbers = #tpu.dot_dimension_numbers<[1], [0], [0], [1], [0, 0, 1, 1], [], []>} : vector<8x4xbf16>, vector<4x256xbf16>, vector<8x256xf32> -> vector<8x256xf32>
    %66 = arith.addf %58, %65 : vector<8x256xf32>
    %67 = vector.extract_strided_slice %1 {offsets = [0, 34], sizes = [4, 256], strides = [1, 1]} : vector<4x290xbf16> to vector<4x256xbf16>
    %c8 = arith.constant 8 : index
    %c0_43 = arith.constant 0 : index
    %68 = vector.load %arg4[%c8, %c0_43] : memref<9x256xbf16, #tpu.memory_space<vmem>>, vector<1x256xbf16>
    %69 = vector.broadcast %68 : vector<1x256xbf16> to vector<4x256xbf16>
    %70 = arith.mulf %67, %69 : vector<4x256xbf16>
    %c8_44 = arith.constant 8 : index
    %c0_45 = arith.constant 0 : index
    %c0_46 = arith.constant 0 : index
    %71 = vector.load %arg2[%c8_44, %c0_45, %c0_46] : memref<9x8x4xbf16, #tpu.memory_space<vmem>>, vector<1x8x4xbf16>
    %72 = vector.shape_cast %71 : vector<1x8x4xbf16> to vector<8x4xbf16>
    %cst_47 = arith.constant dense<0.000000e+00> : vector<8x256xf32>
    %73 = tpu.matmul %72, %70, %cst_47 {dimension_numbers = #tpu.dot_dimension_numbers<[1], [0], [0], [1], [0, 0, 1, 1], [], []>} : vector<8x4xbf16>, vector<4x256xbf16>, vector<8x256xf32> -> vector<8x256xf32>
    %74 = arith.addf %66, %73 : vector<8x256xf32>
    %c0_48 = arith.constant 0 : index
    %c0_49 = arith.constant 0 : index
    %75 = vector.load %arg3[%c0_48, %c0_49] : memref<8x1xf32, #tpu.memory_space<vmem>>, vector<8x1xf32>
    %76 = vector.broadcast %75 : vector<8x1xf32> to vector<8x256xf32>
    %77 = arith.addf %74, %76 : vector<8x256xf32>
    %cst_50 = arith.constant 0.000000e+00 : f32
    %78 = vector.broadcast %cst_50 : f32 to vector<8x256xf32>
    %79 = arith.maximumf %77, %78 : vector<8x256xf32>
    %c0_51 = arith.constant 0 : index
    %c0_52 = arith.constant 0 : index
    %c0_53 = arith.constant 0 : index
    %80 = vector.load %arg5[%c0_51, %c0_52, %c0_53] : memref<1x8x256xf32, #tpu.memory_space<vmem>>, vector<1x8x256xf32>
    %81 = vector.shape_cast %80 : vector<1x8x256xf32> to vector<8x256xf32>
    %82 = vector.shape_cast %79 : vector<8x256xf32> to vector<1x8x256xf32>
    tpu.vector_store %arg5[%c0_51, %c0_52, %c0_53], %82 {strides = array<i32>} : memref<1x8x256xf32, #tpu.memory_space<vmem>>, vector<1x8x256xf32>,
    return
  }
  func.func @transform_0(%arg0: i32) -> (i32, i32, i32) {
    %c0_i32 = arith.constant 0 : i32
    %c0_i32_0 = arith.constant 0 : i32
    %c0_i32_1 = arith.constant 0 : i32
    return %arg0, %c0_i32, %c0_i32_0 : i32, i32, i32
  }
  func.func @transform_1(%arg0: i32) -> (i32, i32, i32) {
    %c0_i32 = arith.constant 0 : i32
    %c0_i32_0 = arith.constant 0 : i32
    %c0_i32_1 = arith.constant 0 : i32
    %c0_i32_2 = arith.constant 0 : i32
    return %c0_i32, %c0_i32_0, %c0_i32_1 : i32, i32, i32
  }
  func.func @transform_2(%arg0: i32) -> (i32, i32) {
    %c0_i32 = arith.constant 0 : i32
    %c0_i32_0 = arith.constant 0 : i32
    %c0_i32_1 = arith.constant 0 : i32
    return %c0_i32, %c0_i32_0 : i32, i32
  }
  func.func @transform_3(%arg0: i32) -> (i32, i32) {
    %c0_i32 = arith.constant 0 : i32
    %c0_i32_0 = arith.constant 0 : i32
    %c0_i32_1 = arith.constant 0 : i32
    return %c0_i32, %c0_i32_0 : i32, i32
  }
  func.func @transform_4(%arg0: i32) -> (i32, i32, i32) {
    %c0_i32 = arith.constant 0 : i32
    %c0_i32_0 = arith.constant 0 : i32
    %c0_i32_1 = arith.constant 0 : i32
    return %arg0, %c0_i32, %c0_i32_0 : i32, i32, i32
  }
}

</mosaic_0001>

<llo_original>
// kernel: tpu_custom_call.1
$region0: #{tpu_custom_call.1}
  #allocation0 [shape = 'u32[]', space=smem, size = 0x4, offset = 0x4, fixed_abs, tag = 'smem constant byte address 0x4 - core index']
  #allocation1 [shape = 'u32[72,128]{1,0:T(1,128)}', space=vmem, size = 0x9000, scoped, tag = 'internal scratch']
  %s0 = inlined_call_operand.vmem [shape: bf16[2,4,290], index: 0, kind: input, shape index: {}]
  %s1 = inlined_call_operand.vmem [shape: bf16[9,8,4], index: 1, kind: input, shape index: {}]
  %s2 = inlined_call_operand.vmem [shape: f32[8,1], index: 2, kind: input, shape index: {}]
  %s3 = inlined_call_operand.vmem [shape: bf16[9,256], index: 3, kind: input, shape index: {}]
  %s4 = inlined_call_operand.hbm [shape: f32[2,8,256], index: 4, kind: output, shape index: {}]
  %s5 = sld [smem:[#allocation0]]
  $region49: #{tpu_custom_call.1} parent=0
    _
  %s7 = ssub.s32 1, %s5
  %s8 = scalar_select 0, %s7, %s5
  $region1: #{tpu_custom_call.1} parent=0
    #allocation2 [shape = 'u8[16384]{0}', space=vmem, size = 0x4000, scoped, tag = 'output window, operand 0']
    #allocation3 [shape = 's32[2]{0}', space=sflag, size = 0x8, scoped, tag = 'scoped memory for tpu_custom_call.1']
    %9 = vsyncpa [#allocation3], 0
    %s10 = scalar_lea.sflag [#allocation3], 1
    %11 = vsyncpa %s10, 0
    loop: start=0, step=1, limit=4
    $region2: #{tpu_custom_call.1} parent=1 // loop_pre_header
      _
    $region3: #{tpu_custom_call.1} parent=1 // loop_header
      %s13 = sphi 0, %s17
      %p14 = scmp.ge.s32.totalorder %s13, 4
      %s23 = sphi 0, %s25
      %s26 = sphi 0, %s23
      %s27 = sphi 0, %s26
      %s43 = sphi 0, %s27
      %s47 = sphi 0, %s47
      %s49 = sphi 0, %s47
      %s50 = sphi 0, %s49
      %s64 = sphi 0, %s50
      %s68 = sphi 0, %s68
      %s70 = sphi 0, %s68
      %s71 = sphi 0, %s70
      %s85 = sphi 0, %s71
      %s89 = sphi 0, %s89
      %s91 = sphi 0, %s89
      %s92 = sphi 0, %s91
      %s106 = sphi 0, %s92
      %s112 = sphi 0, %s114
      %s115 = sphi 0, %s112
      %s116 = sphi 0, %s115
      %s132 = sphi 0, %s116
    $region4: #{tpu_custom_call.1} parent=1 // loop_header_branch
      %16 = sbr.rel (%p14) target = $region8
    $region5: #{tpu_custom_call.1} parent=1 // loop_body
      %s18 = ssub.s32 %s13, 1
      %s19 = ssub.s32 %s13, 2
      %s20 = sadd.s32 %s13, 1
      %s21 = ssub.s32 %s13, %s20
      %p22 = scmp.eq.s32.totalorder %s21, 0
      %s24 = sadd.s32 %s23, 1
      %s25 = scalar_select %p22, %s23, %s24
      %p28 = pneg %p22
      %p29 = scmp.eq.s32.totalorder %s13, 1
      %p30 = por %p28, %p29
      %p31 = scmp.ne.s32.totalorder %s23, %s26
      %p32 = scmp.eq.s32.totalorder %s13, 0
      %p33 = por %p31, %p32
      %p34 = scmp.ne.s32.totalorder %s23, %s26
      %p35 = scmp.eq.s32.totalorder %s18, 1
      %p36 = por %p34, %p35
      %p37 = scmp.ne.s32.totalorder %s26, %s27
      %p38 = scmp.eq.s32.totalorder %s18, 0
      %p39 = por %p37, %p38
      %p40 = scmp.ne.s32.totalorder %s26, %s27
      %p41 = scmp.eq.s32.totalorder %s19, 1
      %p42 = por %p40, %p41
      %p44 = scmp.ne.s32.totalorder %s27, %s43
      %p45 = scmp.eq.s32.totalorder %s19, 0
      %p46 = por %p44, %p45
      %s48 = sadd.s32 %s47, 1
      %p51 = scmp.eq.s32.totalorder %s13, 1
      %p52 = scmp.ne.s32.totalorder %s47, %s49
      %p53 = scmp.eq.s32.totalorder %s13, 0
      %p54 = por %p52, %p53
      %p55 = scmp.ne.s32.totalorder %s47, %s49
      %p56 = scmp.eq.s32.totalorder %s18, 1
      %p57 = por %p55, %p56
      %p58 = scmp.ne.s32.totalorder %s49, %s50
      %p59 = scmp.eq.s32.totalorder %s18, 0
      %p60 = por %p58, %p59
      %p61 = scmp.ne.s32.totalorder %s49, %s50
      %p62 = scmp.eq.s32.totalorder %s19, 1
      %p63 = por %p61, %p62
      %p65 = scmp.ne.s32.totalorder %s50, %s64
      %p66 = scmp.eq.s32.totalorder %s19, 0
      %p67 = por %p65, %p66
      %s69 = sadd.s32 %s68, 1
      %p72 = scmp.eq.s32.totalorder %s13, 1
      %p73 = scmp.ne.s32.totalorder %s68, %s70
      %p74 = scmp.eq.s32.totalorder %s13, 0
      %p75 = por %p73, %p74
      %p76 = scmp.ne.s32.totalorder %s68, %s70
      %p77 = scmp.eq.s32.totalorder %s18, 1
      %p78 = por %p76, %p77
      %p79 = scmp.ne.s32.totalorder %s70, %s71
      %p80 = scmp.eq.s32.totalorder %s18, 0
      %p81 = por %p79, %p80
      %p82 = scmp.ne.s32.totalorder %s70, %s71
      %p83 = scmp.eq.s32.totalorder %s19, 1
      %p84 = por %p82, %p83
      %p86 = scmp.ne.s32.totalorder %s71, %s85
      %p87 = scmp.eq.s32.totalorder %s19, 0
      %p88 = por %p86, %p87
      %s90 = sadd.s32 %s89, 1
      %p93 = scmp.eq.s32.totalorder %s13, 1
      %p94 = scmp.ne.s32.totalorder %s89, %s91
      %p95 = scmp.eq.s32.totalorder %s13, 0
      %p96 = por %p94, %p95
      %p97 = scmp.ne.s32.totalorder %s89, %s91
      %p98 = scmp.eq.s32.totalorder %s18, 1
      %p99 = por %p97, %p98
      %p100 = scmp.ne.s32.totalorder %s91, %s92
      %p101 = scmp.eq.s32.totalorder %s18, 0
      %p102 = por %p100, %p101
      %p103 = scmp.ne.s32.totalorder %s91, %s92
      %p104 = scmp.eq.s32.totalorder %s19, 1
      %p105 = por %p103, %p104
      %p107 = scmp.ne.s32.totalorder %s92, %s106
      %p108 = scmp.eq.s32.totalorder %s19, 0
      %p109 = por %p107, %p108
      %s110 = ssub.s32 %s13, %s20
      %p111 = scmp.eq.s32.totalorder %s110, 0
      %s113 = sadd.s32 %s112, 1
      %s114 = scalar_select %p111, %s112, %s113
      %p117 = pneg %p111
      %p118 = scmp.eq.s32.totalorder %s13, 1
      %p119 = por %p117, %p118
      %p120 = scmp.ne.s32.totalorder %s112, %s115
      %p121 = scmp.eq.s32.totalorder %s13, 0
      %p122 = por %p120, %p121
      %p123 = scmp.ne.s32.totalorder %s112, %s115
      %p124 = scmp.eq.s32.totalorder %s18, 1
      %p125 = por %p123, %p124
      %p126 = scmp.ne.s32.totalorder %s115, %s116
      %p127 = scmp.eq.s32.totalorder %s18, 0
      %p128 = por %p126, %p127
      %p129 = scmp.ne.s32.totalorder %s115, %s116
      %p130 = scmp.eq.s32.totalorder %s19, 1
      %p131 = por %p129, %p130
      %p133 = scmp.ne.s32.totalorder %s116, %s132
      %p134 = scmp.eq.s32.totalorder %s19, 0
      %p135 = por %p133, %p134
      %p136 = scmp.le.s32.totalorder 1, %s13
      %p137 = scmp.lt.s32.totalorder %s13, 3
      %p138 = pnand %p136, %p137
      %p139 = pneg %p138
      // Predicated region
      $region9: #{tpu_custom_call.1} parent=5 // pred_check
        _
      $region10: #{tpu_custom_call.1} parent=5 // pred_check_branch
        %141 = sbr.rel (%p138) target = $region12
      $region11: #{tpu_custom_call.1} parent=5 // pred_region
        %s142 = ssub.s32 %s13, 1
        // Predicated region
        $region13: #{tpu_custom_call.1} parent=11 // pred_check
          %p143 = pneg %p60
        $region14: #{tpu_custom_call.1} parent=11 // pred_check_branch
          %145 = sbr.rel (%p143) target = $region16
        $region15: #{tpu_custom_call.1} parent=11 // pred_region
          _
        $region16: #{tpu_custom_call.1} parent=11 // pred_fallthru
          _
        // Predicated region
        $region17: #{tpu_custom_call.1} parent=11 // pred_check
          %p146 = pneg %p81
        $region18: #{tpu_custom_call.1} parent=11 // pred_check_branch
          %148 = sbr.rel (%p146) target = $region20
        $region19: #{tpu_custom_call.1} parent=11 // pred_region
          _
        $region20: #{tpu_custom_call.1} parent=11 // pred_fallthru
          _
        // Predicated region
        $region21: #{tpu_custom_call.1} parent=11 // pred_check
          %p149 = pneg %p102
        $region22: #{tpu_custom_call.1} parent=11 // pred_check_branch
          %151 = sbr.rel (%p149) target = $region24
        $region23: #{tpu_custom_call.1} parent=11 // pred_region
          _
        $region24: #{tpu_custom_call.1} parent=11 // pred_fallthru
          _
      $region12: #{tpu_custom_call.1} parent=5 // pred_fallthru
        _
      %p152 = scmp.lt.s32.totalorder %s13, 2
      // Predicated region
      $region25: #{tpu_custom_call.1} parent=5 // pred_check
        %p153 = pneg %p152
      $region26: #{tpu_custom_call.1} parent=5 // pred_check_branch
        %155 = sbr.rel (%p153) target = $region28
      $region27: #{tpu_custom_call.1} parent=5 // pred_region
        // Predicated region
        $region29: #{tpu_custom_call.1} parent=27 // pred_check
          %p156 = pneg %p33
        $region30: #{tpu_custom_call.1} parent=27 // pred_check_branch
          %158 = sbr.rel (%p156) target = $region32
        $region31: #{tpu_custom_call.1} parent=27 // pred_region
          %p159 = scmp.lt.s32.totalorder %s13, 1
          %s160 = scalar_select %p159, %s13, 1
          %s161 = smul.addr %s160, 3
          %s162 = smul.addr %s161, 2
          %s163 = scalar_lea.vmem %s0, %s162
        $region32: #{tpu_custom_call.1} parent=27 // pred_fallthru
          _
      $region28: #{tpu_custom_call.1} parent=5 // pred_fallthru
        _
      %p164 = scmp.le.s32.totalorder 1, %s13
      %p165 = scmp.lt.s32.totalorder %s13, 3
      %p166 = pnand %p164, %p165
      %p167 = pneg %p166
      // Predicated region
      $region33: #{tpu_custom_call.1} parent=5 // pred_check
        _
      $region34: #{tpu_custom_call.1} parent=5 // pred_check_branch
        %169 = sbr.rel (%p166) target = $region36
      $region35: #{tpu_custom_call.1} parent=5 // pred_region
        %s170 = ssub.s32 %s13, 1
        %p171 = scmp.lt.s32.totalorder %s18, 1
        %s172 = scalar_select %p171, %s18, 1
        %s173 = smul.addr %s172, 3
        %s174 = smul.addr %s173, 2
        %s175 = scalar_lea.vmem %s0, %s174
        %p176 = pneg %p39
        %p177 = pneg %p36
        %p178 = pneg %p60
        %p179 = pneg %p57
        %p180 = pneg %p81
        %p181 = pneg %p78
        %p182 = pneg %p102
        %p183 = pneg %p99
        %p184 = pneg %p128
        %p185 = pneg %p125
        %s186 = sand.u32 %s115, 1
        %s187 = scalar_lea.sflag [#allocation3], %s186
        %s188 = sand.u32 %s115, 1
        %s189 = smul.addr %s188, 16
        %s190 = scalar_lea.vmem [#allocation2], %s189
        %p191 = scmp.lt.s32.totalorder %s18, 1
        %s192 = scalar_select %p191, %s18, 1
        %s193 = smul.addr %s192, 3
        %s194 = smul.addr %s193, 2
        %s195 = scalar_lea.vmem %s0, %s194
        %v197 = vld [vmem:[%s195] sm:$0x3f]
        %v198 = vld [vmem:[%s3] sm:$0x11]
        %v200 = vunpack.c.l.b16 %v198
        %v201 = vunpack.c.h.b16 %v198
        %v202 = vpack.c.b16 %v200, %v200
        %v203 = vpack.c.b16 %v201, %v201
        %v205 = vpack.i.b16 %v202, %v202
        %v207 = vperm.slane %v205, 0
        %v209 = vpack.i.b16 %v203, %v203
        %v211 = vperm.slane %v209, 0
        %v212 = vunpack.c.l.bf16 %v197
        %v213 = vunpack.c.l.bf16 %v207
        %v214 = vunpack.c.l.bf16 %v211
        %v217 = vrot.slane %v214, 4
        %vm218 = vcmask 1043456
        %v219 = vsel %vm218, %v213, %v217
        %v221 = vmul.f32 %v212, %v219
        %223 = vst [vmem:[#allocation1] ss:$2 sm:$0xff] %v221
        %v224 = vld.sshfl [vmem:[#allocation1] sm:$0xff pattern:$0x75316420]
        %v225 = vld.sshfl [vmem:[#allocation1 + $0x8] sm:$0xff pattern:$0x75316420]
        %v228 = vpack.c.bf16 %v224, %v224
        %v229 = vpack.c.bf16 %v225, %v225
        %v230 = vld [vmem:[%s1] sm:$0xf]
        %v231 = vld [vmem:[%s3] sm:$0x11]
        %v233 = vunpack.c.l.b16 %v231
        %v234 = vunpack.c.h.b16 %v231
        %v235 = vpack.c.b16 %v233, %v233
        %v236 = vpack.c.b16 %v234, %v234
        %v238 = vshrl.u32 %v235, 16
        %v239 = vpack.i.b16 %v238, %v238
        %v241 = vperm.slane %v239, 0
        %v243 = vshrl.u32 %v236, 16
        %v244 = vpack.i.b16 %v243, %v243
        %v246 = vperm.slane %v244, 0
        %v247 = vunpack.c.h.bf16 %v197
        %v248 = vunpack.c.l.bf16 %v241
        %v249 = vunpack.c.l.bf16 %v246
        %v252 = vrot.slane %v249, 4
        %v253 = vsel %vm218, %v248, %v252
        %254 = vrot.lane.b32.xlu0 %v253, 1
        %v255 = vpop.permute.xlu0 %254
        %v256 = vrot.slane %v255, 4
        %vm257 = vcmask 7168
        %v258 = vsel %vm257, %v256, %v255
        %v261 = vmul.f32 %v212, %v258
        %v262 = vmul.f32 %v247, %v256
        %265 = vst [vmem:[#allocation1] ss:$2 sm:$0xff] %v261
        %s266 = scalar_lea.vmem [#allocation1], 16
        %267 = vst [vmem:[%s266] ss:$2 sm:$0xff] %v262
        %v268 = vld.sshfl [vmem:[#allocation1] sm:$0xff pattern:$0x75316420]
        %v269 = vld.sshfl [vmem:[#allocation1 + $0x8] sm:$0xff pattern:$0x75316420]
        %v270 = vld.sshfl [vmem:[#allocation1 + $0x10] sm:$0xff pattern:$0x75316420]
        %v274 = vpack.c.bf16 %v268, %v268
        %v275 = vpack.c.bf16 %v269, %v269
        %v276 = vpack.c.bf16 %v270, %v270
        %s277 = scalar_lea.vmem %s1, 4
        %v278 = vld [vmem:[%s277] sm:$0xf]
        %282 = vrot.lane.b32.xlu0 %v274, 127
        %v283 = vpop.permute.xlu0 %282
        %284 = vrot.lane.b32.xlu0 %v275, 127
        %v285 = vpop.permute.xlu0 %284
        %286 = vrot.lane.b32.xlu0 %v276, 127
        %v287 = vpop.permute.xlu0 %286
        %vm288 = vcmask 1039360
        %v289 = vsel %vm288, %v283, %v285
        %v290 = vsel %vm288, %v285, %v287
        %vm291 = vcmask 31744
        %v293 = vsel %vm291, %v278, 0
        %vm295 = vcmask 1041408
        %v297 = vsel %vm295, %v289, 0
        %v300 = vsel %vm295, %v290, 0
        %302 = vmatpush.bf16.msra.mxu0 0
        %303 = vmatpush.bf16.msra.mxu0 0
        %304 = vmatpush.bf16.msra.mxu0 0
        %305 = vmatpush.bf16.msra.mxu0 0
        %306 = vmatpush.bf16.msra.mxu0 0
        %307 = vmatpush.bf16.msra.mxu0 0
        %308 = vmatpush.bf16.msra.mxu0 0
        %309 = vmatpush.bf16.msra.mxu0 %v297
        %310 = vmatmul.bf16.gmra.mxu0 %v293
        %v311 = vpop.f32.mrf.mxu0
        %v312 = vadd.f32 0.0, %v311
        %v313 = vpop.f32.mrf.mxu0
        %314 = vdwg.mxu0
        %315 = vmatpush.bf16.msra.mxu0 0
        %316 = vmatpush.bf16.msra.mxu0 0
        %317 = vmatpush.bf16.msra.mxu0 0
        %318 = vmatpush.bf16.msra.mxu0 0
        %319 = vmatpush.bf16.msra.mxu0 0
        %320 = vmatpush.bf16.msra.mxu0 0
        %321 = vmatpush.bf16.msra.mxu0 0
        %322 = vmatpush.bf16.msra.mxu0 %v300
        %323 = vmatmul.bf16.gmra.mxu0 %v293
        %v324 = vpop.f32.mrf.mxu0
        %v325 = vadd.f32 0.0, %v324
        %v326 = vpop.f32.mrf.mxu0
        %327 = vdwg.mxu0
        %v329 = vsel %vm291, %v230, 0
        %v332 = vsel %vm295, %v228, 0
        %v335 = vsel %vm295, %v229, 0
        %337 = vmatpush.bf16.msra.mxu0 0
        %338 = vmatpush.bf16.msra.mxu0 0
        %339 = vmatpush.bf16.msra.mxu0 0
        %340 = vmatpush.bf16.msra.mxu0 0
        %341 = vmatpush.bf16.msra.mxu0 0
        %342 = vmatpush.bf16.msra.mxu0 0
        %343 = vmatpush.bf16.msra.mxu0 0
        %344 = vmatpush.bf16.msra.mxu0 %v332
        %345 = vmatmul.bf16.gmra.mxu0 %v329
        %v346 = vpop.f32.mrf.mxu0
        %v347 = vadd.f32 %v312, %v346
        %v348 = vpop.f32.mrf.mxu0
        %349 = vdwg.mxu0
        %350 = vmatpush.bf16.msra.mxu0 0
        %351 = vmatpush.bf16.msra.mxu0 0
        %352 = vmatpush.bf16.msra.mxu0 0
        %353 = vmatpush.bf16.msra.mxu0 0
        %354 = vmatpush.bf16.msra.mxu0 0
        %355 = vmatpush.bf16.msra.mxu0 0
        %356 = vmatpush.bf16.msra.mxu0 0
        %357 = vmatpush.bf16.msra.mxu0 %v335
        %358 = vmatmul.bf16.gmra.mxu0 %v329
        %v359 = vpop.f32.mrf.mxu0
        %v360 = vadd.f32 %v325, %v359
        %v361 = vpop.f32.mrf.mxu0
        %362 = vdwg.mxu0
        %v363 = vld [vmem:[%s3] sm:$0x22]
        %v365 = vunpack.c.l.b16 %v363
        %v366 = vunpack.c.h.b16 %v363
        %v367 = vpack.c.b16 %v365, %v365
        %v368 = vpack.c.b16 %v366, %v366
        %v370 = vpack.i.b16 %v367, %v367
        %v372 = vperm.slane %v370, 1
        %v374 = vpack.i.b16 %v368, %v368
        %v376 = vperm.slane %v374, 1
        %v377 = vunpack.c.l.bf16 %v372
        %v378 = vunpack.c.l.bf16 %v376
        %v381 = vrot.slane %v378, 4
        %v382 = vsel %vm218, %v377, %v381
        %383 = vrot.lane.b32.xlu0 %v382, 2
        %v384 = vpop.permute.xlu0 %383
        %v385 = vrot.slane %v384, 4
        %vm386 = vcmask 15360
        %v387 = vsel %vm386, %v385, %v384
        %v390 = vmul.f32 %v212, %v387
        %v391 = vmul.f32 %v247, %v385
        %394 = vst [vmem:[#allocation1] ss:$2 sm:$0xff] %v390
        %s395 = scalar_lea.vmem [#allocation1], 16
        %396 = vst [vmem:[%s395] ss:$2 sm:$0xff] %v391
        %v397 = vld.sshfl [vmem:[#allocation1] sm:$0xff pattern:$0x75316420]
        %v398 = vld.sshfl [vmem:[#allocation1 + $0x8] sm:$0xff pattern:$0x75316420]
        %v399 = vld.sshfl [vmem:[#allocation1 + $0x10] sm:$0xff pattern:$0x75316420]
        %v403 = vpack.c.bf16 %v397, %v397
        %v404 = vpack.c.bf16 %v398, %v398
        %v405 = vpack.c.bf16 %v399, %v399
        %s406 = scalar_lea.vmem %s1, 8
        %v407 = vld [vmem:[%s406] sm:$0xf]
        %411 = vrot.lane.b32.xlu0 %v403, 126
        %v412 = vpop.permute.xlu0 %411
        %413 = vrot.lane.b32.xlu0 %v404, 126
        %v414 = vpop.permute.xlu0 %413
        %415 = vrot.lane.b32.xlu0 %v405, 126
        %v416 = vpop.permute.xlu0 %415
        %vm417 = vcmask 1031168
        %v418 = vsel %vm417, %v412, %v414
        %v419 = vsel %vm417, %v414, %v416
        %v421 = vsel %vm291, %v407, 0
        %v424 = vsel %vm295, %v418, 0
        %v427 = vsel %vm295, %v419, 0
        %429 = vmatpush.bf16.msra.mxu0 0
        %430 = vmatpush.bf16.msra.mxu0 0
        %431 = vmatpush.bf16.msra.mxu0 0
        %432 = vmatpush.bf16.msra.mxu0 0
        %433 = vmatpush.bf16.msra.mxu0 0
        %434 = vmatpush.bf16.msra.mxu0 0
        %435 = vmatpush.bf16.msra.mxu0 0
        %436 = vmatpush.bf16.msra.mxu0 %v424
        %437 = vmatmul.bf16.gmra.mxu0 %v421
        %v438 = vpop.f32.mrf.mxu0
        %v439 = vadd.f32 0.0, %v438
        %v440 = vpop.f32.mrf.mxu0
        %441 = vdwg.mxu0
        %442 = vmatpush.bf16.msra.mxu0 0
        %443 = vmatpush.bf16.msra.mxu0 0
        %444 = vmatpush.bf16.msra.mxu0 0
        %445 = vmatpush.bf16.msra.mxu0 0
        %446 = vmatpush.bf16.msra.mxu0 0
        %447 = vmatpush.bf16.msra.mxu0 0
        %448 = vmatpush.bf16.msra.mxu0 0
        %449 = vmatpush.bf16.msra.mxu0 %v427
        %450 = vmatmul.bf16.gmra.mxu0 %v421
        %v451 = vpop.f32.mrf.mxu0
        %v452 = vadd.f32 0.0, %v451
        %v453 = vpop.f32.mrf.mxu0
        %454 = vdwg.mxu0
        %v455 = vadd.f32 %v347, %v439
        %v456 = vadd.f32 %v360, %v452
        %v457 = vld [vmem:[%s3] sm:$0x22]
        %v459 = vunpack.c.l.b16 %v457
        %v460 = vunpack.c.h.b16 %v457
        %v461 = vpack.c.b16 %v459, %v459
        %v462 = vpack.c.b16 %v460, %v460
        %v464 = vshrl.u32 %v461, 16
        %v465 = vpack.i.b16 %v464, %v464
        %v467 = vperm.slane %v465, 1
        %v469 = vshrl.u32 %v462, 16
        %v470 = vpack.i.b16 %v469, %v469
        %v472 = vperm.slane %v470, 1
        %v473 = vunpack.c.l.bf16 %v467
        %v474 = vunpack.c.l.bf16 %v472
        %v477 = vrot.slane %v474, 4
        %v478 = vsel %vm218, %v473, %v477
        %479 = vrot.lane.b32.xlu0 %v478, 16
        %v480 = vpop.permute.xlu0 %479
        %v481 = vrot.slane %v480, 4
        %vm482 = vcmask 130048
        %v483 = vsel %vm482, %v481, %v480
        %v486 = vmul.f32 %v212, %v483
        %v487 = vmul.f32 %v247, %v481
        %490 = vst [vmem:[#allocation1] ss:$2 sm:$0xff] %v486
        %s491 = scalar_lea.vmem [#allocation1], 16
        %492 = vst [vmem:[%s491] ss:$2 sm:$0xff] %v487
        %v493 = vld.sshfl [vmem:[#allocation1] sm:$0xff pattern:$0x75316420]
        %v494 = vld.sshfl [vmem:[#allocation1 + $0x8] sm:$0xff pattern:$0x75316420]
        %v495 = vld.sshfl [vmem:[#allocation1 + $0x10] sm:$0xff pattern:$0x75316420]
        %v499 = vpack.c.bf16 %v493, %v493
        %v500 = vpack.c.bf16 %v494, %v494
        %v501 = vpack.c.bf16 %v495, %v495
        %s502 = scalar_lea.vmem %s1, 12
        %v503 = vld [vmem:[%s502] sm:$0xf]
        %507 = vrot.lane.b32.xlu0 %v499, 112
        %v508 = vpop.permute.xlu0 %507
        %509 = vrot.lane.b32.xlu0 %v500, 112
        %v510 = vpop.permute.xlu0 %509
        %511 = vrot.lane.b32.xlu0 %v501, 112
        %v512 = vpop.permute.xlu0 %511
        %vm513 = vcmask 916480
        %v514 = vsel %vm513, %v508, %v510
        %v515 = vsel %vm513, %v510, %v512
        %v517 = vsel %vm291, %v503, 0
        %v520 = vsel %vm295, %v514, 0
        %v523 = vsel %vm295, %v515, 0
        %525 = vmatpush.bf16.msra.mxu0 0
        %526 = vmatpush.bf16.msra.mxu0 0
        %527 = vmatpush.bf16.msra.mxu0 0
        %528 = vmatpush.bf16.msra.mxu0 0
        %529 = vmatpush.bf16.msra.mxu0 0
        %530 = vmatpush.bf16.msra.mxu0 0
        %531 = vmatpush.bf16.msra.mxu0 0
        %532 = vmatpush.bf16.msra.mxu0 %v520
        %533 = vmatmul.bf16.gmra.mxu0 %v517
        %v534 = vpop.f32.mrf.mxu0
        %v535 = vadd.f32 0.0, %v534
        %v536 = vpop.f32.mrf.mxu0
        %537 = vdwg.mxu0
        %538 = vmatpush.bf16.msra.mxu0 0
        %539 = vmatpush.bf16.msra.mxu0 0
        %540 = vmatpush.bf16.msra.mxu0 0
        %541 = vmatpush.bf16.msra.mxu0 0
        %542 = vmatpush.bf16.msra.mxu0 0
        %543 = vmatpush.bf16.msra.mxu0 0
        %544 = vmatpush.bf16.msra.mxu0 0
        %545 = vmatpush.bf16.msra.mxu0 %v523
        %546 = vmatmul.bf16.gmra.mxu0 %v517
        %v547 = vpop.f32.mrf.mxu0
        %v548 = vadd.f32 0.0, %v547
        %v549 = vpop.f32.mrf.mxu0
        %550 = vdwg.mxu0
        %v551 = vadd.f32 %v455, %v535
        %v552 = vadd.f32 %v456, %v548
        %v553 = vld [vmem:[%s3] sm:$0x44]
        %v555 = vunpack.c.l.b16 %v553
        %v556 = vunpack.c.h.b16 %v553
        %v557 = vpack.c.b16 %v555, %v555
        %v558 = vpack.c.b16 %v556, %v556
        %v560 = vpack.i.b16 %v557, %v557
        %v562 = vperm.slane %v560, 2
        %v564 = vpack.i.b16 %v558, %v558
        %v566 = vperm.slane %v564, 2
        %v567 = vunpack.c.l.bf16 %v562
        %v568 = vunpack.c.l.bf16 %v566
        %v571 = vrot.slane %v568, 4
        %v572 = vsel %vm218, %v567, %v571
        %573 = vrot.lane.b32.xlu0 %v572, 17
        %v574 = vpop.permute.xlu0 %573
        %v575 = vrot.slane %v574, 4
        %vm576 = vcmask 138240
        %v577 = vsel %vm576, %v575, %v574
        %v580 = vmul.f32 %v212, %v577
        %v581 = vmul.f32 %v247, %v575
        %584 = vst [vmem:[#allocation1] ss:$2 sm:$0xff] %v580
        %s585 = scalar_lea.vmem [#allocation1], 16
        %586 = vst [vmem:[%s585] ss:$2 sm:$0xff] %v581
        %v587 = vld.sshfl [vmem:[#allocation1] sm:$0xff pattern:$0x75316420]
        %v588 = vld.sshfl [vmem:[#allocation1 + $0x8] sm:$0xff pattern:$0x75316420]
        %v589 = vld.sshfl [vmem:[#allocation1 + $0x10] sm:$0xff pattern:$0x75316420]
        %v593 = vpack.c.bf16 %v587, %v587
        %v594 = vpack.c.bf16 %v588, %v588
        %v595 = vpack.c.bf16 %v589, %v589
        %s596 = scalar_lea.vmem %s1, 16
        %v597 = vld [vmem:[%s596] sm:$0xf]
        %601 = vrot.lane.b32.xlu0 %v593, 111
        %v602 = vpop.permute.xlu0 %601
        %603 = vrot.lane.b32.xlu0 %v594, 111
        %v604 = vpop.permute.xlu0 %603
        %605 = vrot.lane.b32.xlu0 %v595, 111
        %v606 = vpop.permute.xlu0 %605
        %vm607 = vcmask 908288
        %v608 = vsel %vm607, %v602, %v604
        %v609 = vsel %vm607, %v604, %v606
        %v611 = vsel %vm291, %v597, 0
        %v614 = vsel %vm295, %v608, 0
        %v617 = vsel %vm295, %v609, 0
        %619 = vmatpush.bf16.msra.mxu0 0
        %620 = vmatpush.bf16.msra.mxu0 0
        %621 = vmatpush.bf16.msra.mxu0 0
        %622 = vmatpush.bf16.msra.mxu0 0
        %623 = vmatpush.bf16.msra.mxu0 0
        %624 = vmatpush.bf16.msra.mxu0 0
        %625 = vmatpush.bf16.msra.mxu0 0
        %626 = vmatpush.bf16.msra.mxu0 %v614
        %627 = vmatmul.bf16.gmra.mxu0 %v611
        %v628 = vpop.f32.mrf.mxu0
        %v629 = vadd.f32 0.0, %v628
        %v630 = vpop.f32.mrf.mxu0
        %631 = vdwg.mxu0
        %632 = vmatpush.bf16.msra.mxu0 0
        %633 = vmatpush.bf16.msra.mxu0 0
        %634 = vmatpush.bf16.msra.mxu0 0
        %635 = vmatpush.bf16.msra.mxu0 0
        %636 = vmatpush.bf16.msra.mxu0 0
        %637 = vmatpush.bf16.msra.mxu0 0
        %638 = vmatpush.bf16.msra.mxu0 0
        %639 = vmatpush.bf16.msra.mxu0 %v617
        %640 = vmatmul.bf16.gmra.mxu0 %v611
        %v641 = vpop.f32.mrf.mxu0
        %v642 = vadd.f32 0.0, %v641
        %v643 = vpop.f32.mrf.mxu0
        %644 = vdwg.mxu0
        %v645 = vadd.f32 %v551, %v629
        %v646 = vadd.f32 %v552, %v642
        %v647 = vld [vmem:[%s3] sm:$0x44]
        %v649 = vunpack.c.l.b16 %v647
        %v650 = vunpack.c.h.b16 %v647
        %v651 = vpack.c.b16 %v649, %v649
        %v652 = vpack.c.b16 %v650, %v650
        %v654 = vshrl.u32 %v651, 16
        %v655 = vpack.i.b16 %v654, %v654
        %v657 = vperm.slane %v655, 2
        %v659 = vshrl.u32 %v652, 16
        %v660 = vpack.i.b16 %v659, %v659
        %v662 = vperm.slane %v660, 2
        %v663 = vunpack.c.l.bf16 %v657
        %v664 = vunpack.c.l.bf16 %v662
        %v667 = vrot.slane %v664, 4
        %v668 = vsel %vm218, %v663, %v667
        %669 = vrot.lane.b32.xlu0 %v668, 18
        %v670 = vpop.permute.xlu0 %669
        %v671 = vrot.slane %v670, 4
        %vm672 = vcmask 146432
        %v673 = vsel %vm672, %v671, %v670
        %v676 = vmul.f32 %v212, %v673
        %v677 = vmul.f32 %v247, %v671
        %680 = vst [vmem:[#allocation1] ss:$2 sm:$0xff] %v676
        %s681 = scalar_lea.vmem [#allocation1], 16
        %682 = vst [vmem:[%s681] ss:$2 sm:$0xff] %v677
        %v683 = vld.sshfl [vmem:[#allocation1] sm:$0xff pattern:$0x75316420]
        %v684 = vld.sshfl [vmem:[#allocation1 + $0x8] sm:$0xff pattern:$0x75316420]
        %v685 = vld.sshfl [vmem:[#allocation1 + $0x10] sm:$0xff pattern:$0x75316420]
        %v689 = vpack.c.bf16 %v683, %v683
        %v690 = vpack.c.bf16 %v684, %v684
        %v691 = vpack.c.bf16 %v685, %v685
        %s692 = scalar_lea.vmem %s1, 20
        %v693 = vld [vmem:[%s692] sm:$0xf]
        %697 = vrot.lane.b32.xlu0 %v689, 110
        %v698 = vpop.permute.xlu0 %697
        %699 = vrot.lane.b32.xlu0 %v690, 110
        %v700 = vpop.permute.xlu0 %699
        %701 = vrot.lane.b32.xlu0 %v691, 110
        %v702 = vpop.permute.xlu0 %701
        %vm703 = vcmask 900096
        %v704 = vsel %vm703, %v698, %v700
        %v705 = vsel %vm703, %v700, %v702
        %v707 = vsel %vm291, %v693, 0
        %v710 = vsel %vm295, %v704, 0
        %v713 = vsel %vm295, %v705, 0
        %715 = vmatpush.bf16.msra.mxu0 0
        %716 = vmatpush.bf16.msra.mxu0 0
        %717 = vmatpush.bf16.msra.mxu0 0
        %718 = vmatpush.bf16.msra.mxu0 0
        %719 = vmatpush.bf16.msra.mxu0 0
        %720 = vmatpush.bf16.msra.mxu0 0
        %721 = vmatpush.bf16.msra.mxu0 0
        %722 = vmatpush.bf16.msra.mxu0 %v710
        %723 = vmatmul.bf16.gmra.mxu0 %v707
        %v724 = vpop.f32.mrf.mxu0
        %v725 = vadd.f32 0.0, %v724
        %v726 = vpop.f32.mrf.mxu0
        %727 = vdwg.mxu0
        %728 = vmatpush.bf16.msra.mxu0 0
        %729 = vmatpush.bf16.msra.mxu0 0
        %730 = vmatpush.bf16.msra.mxu0 0
        %731 = vmatpush.bf16.msra.mxu0 0
        %732 = vmatpush.bf16.msra.mxu0 0
        %733 = vmatpush.bf16.msra.mxu0 0
        %734 = vmatpush.bf16.msra.mxu0 0
        %735 = vmatpush.bf16.msra.mxu0 %v713
        %736 = vmatmul.bf16.gmra.mxu0 %v707
        %v737 = vpop.f32.mrf.mxu0
        %v738 = vadd.f32 0.0, %v737
        %v739 = vpop.f32.mrf.mxu0
        %740 = vdwg.mxu0
        %v741 = vadd.f32 %v645, %v725
        %v742 = vadd.f32 %v646, %v738
        %v743 = vld [vmem:[%s3] sm:$0x88]
        %v745 = vunpack.c.l.b16 %v743
        %v746 = vunpack.c.h.b16 %v743
        %v747 = vpack.c.b16 %v745, %v745
        %v748 = vpack.c.b16 %v746, %v746
        %v750 = vpack.i.b16 %v747, %v747
        %v752 = vperm.slane %v750, 3
        %v754 = vpack.i.b16 %v748, %v748
        %v756 = vperm.slane %v754, 3
        %v757 = vunpack.c.l.bf16 %v752
        %v758 = vunpack.c.l.bf16 %v756
        %v761 = vrot.slane %v758, 4
        %v762 = vsel %vm218, %v757, %v761
        %763 = vrot.lane.b32.xlu0 %v762, 32
        %v764 = vpop.permute.xlu0 %763
        %v765 = vrot.slane %v764, 4
        %vm766 = vcmask 261120
        %v767 = vsel %vm766, %v765, %v764
        %v770 = vmul.f32 %v212, %v767
        %v771 = vmul.f32 %v247, %v765
        %774 = vst [vmem:[#allocation1] ss:$2 sm:$0xff] %v770
        %s775 = scalar_lea.vmem [#allocation1], 16
        %776 = vst [vmem:[%s775] ss:$2 sm:$0xff] %v771
        %v777 = vld.sshfl [vmem:[#allocation1] sm:$0xff pattern:$0x75316420]
        %v778 = vld.sshfl [vmem:[#allocation1 + $0x8] sm:$0xff pattern:$0x75316420]
        %v779 = vld.sshfl [vmem:[#allocation1 + $0x10] sm:$0xff pattern:$0x75316420]
        %v783 = vpack.c.bf16 %v777, %v777
        %v784 = vpack.c.bf16 %v778, %v778
        %v785 = vpack.c.bf16 %v779, %v779
        %s786 = scalar_lea.vmem %s1, 24
        %v787 = vld [vmem:[%s786] sm:$0xf]
        %791 = vrot.lane.b32.xlu0 %v783, 96
        %v792 = vpop.permute.xlu0 %791
        %793 = vrot.lane.b32.xlu0 %v784, 96
        %v794 = vpop.permute.xlu0 %793
        %795 = vrot.lane.b32.xlu0 %v785, 96
        %v796 = vpop.permute.xlu0 %795
        %vm797 = vcmask 785408
        %v798 = vsel %vm797, %v792, %v794
        %v799 = vsel %vm797, %v794, %v796
        %v801 = vsel %vm291, %v787, 0
        %v804 = vsel %vm295, %v798, 0
        %v807 = vsel %vm295, %v799, 0
        %809 = vmatpush.bf16.msra.mxu0 0
        %810 = vmatpush.bf16.msra.mxu0 0
        %811 = vmatpush.bf16.msra.mxu0 0
        %812 = vmatpush.bf16.msra.mxu0 0
        %813 = vmatpush.bf16.msra.mxu0 0
        %814 = vmatpush.bf16.msra.mxu0 0
        %815 = vmatpush.bf16.msra.mxu0 0
        %816 = vmatpush.bf16.msra.mxu0 %v804
        %817 = vmatmul.bf16.gmra.mxu0 %v801
        %v818 = vpop.f32.mrf.mxu0
        %v819 = vadd.f32 0.0, %v818
        %v820 = vpop.f32.mrf.mxu0
        %821 = vdwg.mxu0
        %822 = vmatpush.bf16.msra.mxu0 0
        %823 = vmatpush.bf16.msra.mxu0 0
        %824 = vmatpush.bf16.msra.mxu0 0
        %825 = vmatpush.bf16.msra.mxu0 0
        %826 = vmatpush.bf16.msra.mxu0 0
        %827 = vmatpush.bf16.msra.mxu0 0
        %828 = vmatpush.bf16.msra.mxu0 0
        %829 = vmatpush.bf16.msra.mxu0 %v807
        %830 = vmatmul.bf16.gmra.mxu0 %v801
        %v831 = vpop.f32.mrf.mxu0
        %v832 = vadd.f32 0.0, %v831
        %v833 = vpop.f32.mrf.mxu0
        %834 = vdwg.mxu0
        %v835 = vadd.f32 %v741, %v819
        %v836 = vadd.f32 %v742, %v832
        %v837 = vld [vmem:[%s3] sm:$0x88]
        %v839 = vunpack.c.l.b16 %v837
        %v840 = vunpack.c.h.b16 %v837
        %v841 = vpack.c.b16 %v839, %v839
        %v842 = vpack.c.b16 %v840, %v840
        %v844 = vshrl.u32 %v841, 16
        %v845 = vpack.i.b16 %v844, %v844
        %v847 = vperm.slane %v845, 3
        %v849 = vshrl.u32 %v842, 16
        %v850 = vpack.i.b16 %v849, %v849
        %v852 = vperm.slane %v850, 3
        %v853 = vunpack.c.l.bf16 %v847
        %v854 = vunpack.c.l.bf16 %v852
        %v857 = vrot.slane %v854, 4
        %v858 = vsel %vm218, %v853, %v857
        %859 = vrot.lane.b32.xlu0 %v858, 33
        %v860 = vpop.permute.xlu0 %859
        %v861 = vrot.slane %v860, 4
        %vm862 = vcmask 269312
        %v863 = vsel %vm862, %v861, %v860
        %v866 = vmul.f32 %v212, %v863
        %v867 = vmul.f32 %v247, %v861
        %870 = vst [vmem:[#allocation1] ss:$2 sm:$0xff] %v866
        %s871 = scalar_lea.vmem [#allocation1], 16
        %872 = vst [vmem:[%s871] ss:$2 sm:$0xff] %v867
        %v873 = vld.sshfl [vmem:[#allocation1] sm:$0xff pattern:$0x75316420]
        %v874 = vld.sshfl [vmem:[#allocation1 + $0x8] sm:$0xff pattern:$0x75316420]
        %v875 = vld.sshfl [vmem:[#allocation1 + $0x10] sm:$0xff pattern:$0x75316420]
        %v879 = vpack.c.bf16 %v873, %v873
        %v880 = vpack.c.bf16 %v874, %v874
        %v881 = vpack.c.bf16 %v875, %v875
        %s882 = scalar_lea.vmem %s1, 28
        %v883 = vld [vmem:[%s882] sm:$0xf]
        %887 = vrot.lane.b32.xlu0 %v879, 95
        %v888 = vpop.permute.xlu0 %887
        %889 = vrot.lane.b32.xlu0 %v880, 95
        %v890 = vpop.permute.xlu0 %889
        %891 = vrot.lane.b32.xlu0 %v881, 95
        %v892 = vpop.permute.xlu0 %891
        %vm893 = vcmask 777216
        %v894 = vsel %vm893, %v888, %v890
        %v895 = vsel %vm893, %v890, %v892
        %v897 = vsel %vm291, %v883, 0
        %v900 = vsel %vm295, %v894, 0
        %v903 = vsel %vm295, %v895, 0
        %905 = vmatpush.bf16.msra.mxu0 0
        %906 = vmatpush.bf16.msra.mxu0 0
        %907 = vmatpush.bf16.msra.mxu0 0
        %908 = vmatpush.bf16.msra.mxu0 0
        %909 = vmatpush.bf16.msra.mxu0 0
        %910 = vmatpush.bf16.msra.mxu0 0
        %911 = vmatpush.bf16.msra.mxu0 0
        %912 = vmatpush.bf16.msra.mxu0 %v900
        %913 = vmatmul.bf16.gmra.mxu0 %v897
        %v914 = vpop.f32.mrf.mxu0
        %v915 = vadd.f32 0.0, %v914
        %v916 = vpop.f32.mrf.mxu0
        %917 = vdwg.mxu0
        %918 = vmatpush.bf16.msra.mxu0 0
        %919 = vmatpush.bf16.msra.mxu0 0
        %920 = vmatpush.bf16.msra.mxu0 0
        %921 = vmatpush.bf16.msra.mxu0 0
        %922 = vmatpush.bf16.msra.mxu0 0
        %923 = vmatpush.bf16.msra.mxu0 0
        %924 = vmatpush.bf16.msra.mxu0 0
        %925 = vmatpush.bf16.msra.mxu0 %v903
        %926 = vmatmul.bf16.gmra.mxu0 %v897
        %v927 = vpop.f32.mrf.mxu0
        %v928 = vadd.f32 0.0, %v927
        %v929 = vpop.f32.mrf.mxu0
        %930 = vdwg.mxu0
        %v931 = vadd.f32 %v835, %v915
        %v932 = vadd.f32 %v836, %v928
        %v933 = vld [vmem:[%s3 + $0x8] sm:$0x11]
        %v935 = vunpack.c.l.b16 %v933
        %v936 = vunpack.c.h.b16 %v933
        %v937 = vpack.c.b16 %v935, %v935
        %v938 = vpack.c.b16 %v936, %v936
        %v940 = vpack.i.b16 %v937, %v937
        %v942 = vperm.slane %v940, 0
        %v944 = vpack.i.b16 %v938, %v938
        %v946 = vperm.slane %v944, 0
        %v947 = vunpack.c.l.bf16 %v942
        %v948 = vunpack.c.l.bf16 %v946
        %v951 = vrot.slane %v948, 4
        %v952 = vsel %vm218, %v947, %v951
        %953 = vrot.lane.b32.xlu0 %v952, 34
        %v954 = vpop.permute.xlu0 %953
        %v955 = vrot.slane %v954, 4
        %vm956 = vcmask 277504
        %v957 = vsel %vm956, %v955, %v954
        %v960 = vmul.f32 %v212, %v957
        %v961 = vmul.f32 %v247, %v955
        %964 = vst [vmem:[#allocation1] ss:$2 sm:$0xff] %v960
        %s965 = scalar_lea.vmem [#allocation1], 16
        %966 = vst [vmem:[%s965] ss:$2 sm:$0xff] %v961
        %v967 = vld.sshfl [vmem:[#allocation1] sm:$0xff pattern:$0x75316420]
        %v968 = vld.sshfl [vmem:[#allocation1 + $0x8] sm:$0xff pattern:$0x75316420]
        %v969 = vld.sshfl [vmem:[#allocation1 + $0x10] sm:$0xff pattern:$0x75316420]
        %v973 = vpack.c.bf16 %v967, %v967
        %v974 = vpack.c.bf16 %v968, %v968
        %v975 = vpack.c.bf16 %v969, %v969
        %s976 = scalar_lea.vmem %s1, 32
        %v977 = vld [vmem:[%s976] sm:$0xf]
        %981 = vrot.lane.b32.xlu0 %v973, 94
        %v982 = vpop.permute.xlu0 %981
        %983 = vrot.lane.b32.xlu0 %v974, 94
        %v984 = vpop.permute.xlu0 %983
        %985 = vrot.lane.b32.xlu0 %v975, 94
        %v986 = vpop.permute.xlu0 %985
        %vm987 = vcmask 769024
        %v988 = vsel %vm987, %v982, %v984
        %v989 = vsel %vm987, %v984, %v986
        %v991 = vsel %vm291, %v977, 0
        %v994 = vsel %vm295, %v988, 0
        %v997 = vsel %vm295, %v989, 0
        %999 = vmatpush.bf16.msra.mxu0 0
        %1000 = vmatpush.bf16.msra.mxu0 0
        %1001 = vmatpush.bf16.msra.mxu0 0
        %1002 = vmatpush.bf16.msra.mxu0 0
        %1003 = vmatpush.bf16.msra.mxu0 0
        %1004 = vmatpush.bf16.msra.mxu0 0
        %1005 = vmatpush.bf16.msra.mxu0 0
        %1006 = vmatpush.bf16.msra.mxu0 %v994
        %1007 = vmatmul.bf16.gmra.mxu0 %v991
        %v1008 = vpop.f32.mrf.mxu0
        %v1009 = vadd.f32 0.0, %v1008
        %v1010 = vpop.f32.mrf.mxu0
        %1011 = vdwg.mxu0
        %1012 = vmatpush.bf16.msra.mxu0 0
        %1013 = vmatpush.bf16.msra.mxu0 0
        %1014 = vmatpush.bf16.msra.mxu0 0
        %1015 = vmatpush.bf16.msra.mxu0 0
        %1016 = vmatpush.bf16.msra.mxu0 0
        %1017 = vmatpush.bf16.msra.mxu0 0
        %1018 = vmatpush.bf16.msra.mxu0 0
        %1019 = vmatpush.bf16.msra.mxu0 %v997
        %1020 = vmatmul.bf16.gmra.mxu0 %v991
        %v1021 = vpop.f32.mrf.mxu0
        %v1022 = vadd.f32 0.0, %v1021
        %v1023 = vpop.f32.mrf.mxu0
        %1024 = vdwg.mxu0
        %v1025 = vadd.f32 %v931, %v1009
        %v1026 = vadd.f32 %v932, %v1022
        %v1027 = vld [vmem:[%s2] sm:$0xff]
        %1029 = vset.pattern.permute.xlu0 0
        %1030 = vperm.xlu0 %1029, %v1027
        %v1031 = vpop.permute.xlu0 %1030
        %v1033 = vadd.f32 %v1025, %v1031
        %v1034 = vadd.f32 %v1026, %v1031
        %v1035 = vmax.f32 %v1033, 0.0
        %v1036 = vmax.f32 %v1034, 0.0
        %1037 = vst [vmem:[%s190] sm:$0xff] %v1035
        %1038 = vst [vmem:[%s190 + $0x8] sm:$0xff] %v1036
        %s1039 = sand.u32 %s115, 1
        %s1040 = scalar_lea.sflag [#allocation3], %s1039
        %s1041 = sand.u32 %s115, 1
        %s1042 = smul.addr %s1041, 16
        %s1043 = scalar_lea.vmem [#allocation2], %s1042
        // Predicated region
        $region37: #{tpu_custom_call.1} parent=35 // pred_check
          %p1044 = pneg %p125
        $region38: #{tpu_custom_call.1} parent=35 // pred_check_branch
          %1046 = sbr.rel (%p1044) target = $region40
        $region39: #{tpu_custom_call.1} parent=35 // pred_region
          %1048 = vsyncadd %s1040, 0
          %s1049 = smul.addr %s18, 2
          %s1050 = smul.addr %s1049, 8
          %s1051 = scalar_lea.hbm %s4, %s1050
          %s1053 = sshll.u32 %s1043, 4
          %s1054 = int_to_ptr.vmem [resolvable:$true] %s1053
          %s1055 = sshll.u32 %s1051, 4
          %s1056 = int_to_ptr.hbm [resolvable:$true] %s1055
          %1058 = dma.vmem_to_hbm [thread:$0]  %s1054, 256, %s1056, %s1040
        $region40: #{tpu_custom_call.1} parent=35 // pred_fallthru
          _
      $region36: #{tpu_custom_call.1} parent=5 // pred_fallthru
        _
      %p1059 = scmp.le.s32.totalorder 2, %s13
      // Predicated region
      $region41: #{tpu_custom_call.1} parent=5 // pred_check
        %p1060 = pneg %p1059
      $region42: #{tpu_custom_call.1} parent=5 // pred_check_branch
        %1062 = sbr.rel (%p1060) target = $region44
      $region43: #{tpu_custom_call.1} parent=5 // pred_region
        %s1063 = ssub.s32 %s13, 2
        // Predicated region
        $region45: #{tpu_custom_call.1} parent=43 // pred_check
          %p1064 = pneg %p131
        $region46: #{tpu_custom_call.1} parent=43 // pred_check_branch
          %1066 = sbr.rel (%p1064) target = $region48
        $region47: #{tpu_custom_call.1} parent=43 // pred_region
          %s1067 = sand.u32 %s116, 1
          %s1068 = scalar_lea.sflag [#allocation3], %s1067
          %s1069 = sand.u32 %s116, 1
          %s1070 = smul.addr %s1069, 16
          %s1071 = scalar_lea.vmem [#allocation2], %s1070
          %1073 = dma.done %s1068, 256
        $region48: #{tpu_custom_call.1} parent=43 // pred_fallthru
          _
      $region44: #{tpu_custom_call.1} parent=5 // pred_fallthru
        _
    $region6: #{tpu_custom_call.1} parent=1 // loop_footer
      %s17 = sadd.s32 1, %s13
    $region7: #{tpu_custom_call.1} parent=1 // loop_footer_branch
      %12 = sbr.rel target = $region3
    $region8: #{tpu_custom_call.1} parent=1 // loop_exit
      _
    %1074 = vsyncpa [#allocation3], 1
    %s1075 = scalar_lea.sflag [#allocation3], 1
    %1076 = vsyncpa %s1075, 1

</llo_original>
